<compile_context>
chip_gen: v5e
topology: v5e:2x2
jax: 0.10.0
libtpu: 0.0.40
codegen_flags: <defaults>
</compile_context>

<pallas_src>
import functools

import jax
import jax.numpy as jnp
from jax import lax
from jax.experimental import pallas as pl
from jax.experimental.pallas import tpu as pltpu

# MLP layer sizes from NuNet.__init__
LAYER_DIMS = [361, 32, 64, 128, 64, 8, 1]
IN_FEATURES = LAYER_DIMS[0]
NUM_LAYERS = len(LAYER_DIMS) - 1


def _round_up(n, m):
    return ((n + m - 1) // m) * m


def nunet_kernel(x_ref, w1, b1, w2, b2, w3, b3, w4, b4, w5, b5, w6t, b6,
                 out_ref):
    """Fused 6-layer MLP; the whole layer chain stays in VMEM/vregs.

    x_ref   : [tb, 361] f32 input tile (raw, cast to bf16 in-kernel).
    w1..w5  : [in_i, out_i] bf16 weights;  b1..b5: [1, out_i] f32 biases.
    w6t     : [1, 8] bf16 final weight in [out, in] layout;  b6: [1, 1] f32.
    out_ref : [1, 1, tb] f32 lane-dense output row for this batch tile.
    """
    # VPU cast f32 -> bf16 (free: the kernel is HBM-bound on the x read).
    h = x_ref[...].astype(jnp.bfloat16)

    # Layers 1..5: h = relu(h @ W + b), bf16 MXU operands, f32 accumulate/bias.
    for w, b in ((w1, b1), (w2, b2), (w3, b3), (w4, b4), (w5, b5)):
        a = jnp.dot(h, w[...], preferred_element_type=jnp.float32) + b[...]
        h = jnp.maximum(a, 0.0).astype(jnp.bfloat16)

    # Final Linear(8, 1) computed transposed (contract last dims of both
    # operands, the q@k^T pattern) so the result lands lane-dense as (1, tb):
    #   o[0, t] = sum_k w6t[0, k] * h[t, k]
    o = lax.dot_general(
        w6t[...], h,
        dimension_numbers=(((1,), (1,)), ((), ())),
        preferred_element_type=jnp.float32,
    ) + b6[...]
    out_ref[...] = jnp.maximum(o, 0.0)[None]


def _nunet_forward_impl(x, params, *, block_batch=2048):
    """x: [B, 361] f32; params: flat list [w1, b1, ..., w6, b6], wi [in, out]."""
    batch, feat = x.shape
    assert feat == IN_FEATURES, feat

    # Batch tile: multiple of 8 (sublane), capped at block_batch.
    tb = _round_up(min(block_batch, _round_up(batch, 8)), 8)
    num_tiles = pl.cdiv(batch, tb)

    # One-time (jit-fused) param prep: bf16 weights, f32 [1, out] biases; the
    # final weight is stored [out, in] = (1, 8) for the transposed last dot.
    prepped = []
    for li in range(NUM_LAYERS):
        w = params[2 * li].astype(jnp.bfloat16)
        b = params[2 * li + 1].astype(jnp.float32).reshape(1, -1)
        if li == NUM_LAYERS - 1:
            w = w.T
        prepped += [w, b]

    # x: batch-tiled, software-pipelined.  Weights/biases: constant (0, 0)
    # block index -> fetched once, VMEM-resident across all batch tiles.
    in_specs = [pl.BlockSpec((tb, IN_FEATURES), lambda i: (i, 0))]
    in_specs += [pl.BlockSpec(a.shape, lambda i: (0, 0)) for a in prepped]

    grid_spec = pltpu.PrefetchScalarGridSpec(
        num_scalar_prefetch=0,
        grid=(num_tiles,),
        in_specs=in_specs,
        # Lane-dense (1, 1, tb) output block per tile (full-vreg stores,
        # contiguous writeback).
        out_specs=pl.BlockSpec((1, 1, tb), lambda i: (i, 0, 0)),
    )

    out = pl.pallas_call(
        nunet_kernel,
        grid_spec=grid_spec,
        out_shape=jax.ShapeDtypeStruct((num_tiles, 1, tb), jnp.float32),
        compiler_params=pltpu.CompilerParams(
            # Batch axis is embarrassingly parallel; harmless on 1-TC chips.
            dimension_semantics=("parallel",),
        ),
    )(x, *prepped)

    # (num_tiles, 1, tb) -> (batch, 1); rows past `batch` in the last tile come
    # from padded (out-of-bounds) reads and are dropped here.
    return out.reshape(-1)[:batch].reshape(batch, 1)


# Jitted entry point: param prep, pallas_call and output slice fuse into one
# program; block_batch is a static tiling knob.
nunet_forward = jax.jit(_nunet_forward_impl, static_argnames=("block_batch",))


def init_params(key):
    """Deterministic synthetic parameters matching nn.Linear shapes.

    PyTorch Linear stores weight as [out, in]; we keep the transposed
    [in, out] layout so the kernel avoids an in-kernel transpose.
    """
    params = []
    for li, (fan_in, fan_out) in enumerate(zip(LAYER_DIMS[:-1], LAYER_DIMS[1:])):
        kw, kb, key = jax.random.split(jax.random.fold_in(key, li), 3)
        bound = 1.0 / jnp.sqrt(fan_in)
        w = jax.random.uniform(
            kw, (fan_in, fan_out), jnp.float32, minval=-bound, maxval=bound
        )
        b = jax.random.uniform(
            kb, (1, fan_out), jnp.float32, minval=-bound, maxval=bound
        )
        params += [w, b]
    return params


def reference_forward_f32(x, params):
    """Plain-JAX full-f32 reference (module semantics)."""
    h = x
    for li in range(NUM_LAYERS):
        h = jnp.maximum(h @ params[2 * li] + params[2 * li + 1], 0.0)
    return h


def reference_forward_bf16(x, params):
    """Plain-JAX reference mirroring the kernel's dtype path (bf16 operands,
    f32 accumulate/bias/ReLU)."""
    h = x.astype(jnp.bfloat16).astype(jnp.float32)
    for li in range(NUM_LAYERS):
        w = params[2 * li].astype(jnp.bfloat16).astype(jnp.float32)
        b = params[2 * li + 1].astype(jnp.float32)
        h = jnp.maximum(
            jnp.dot(h, w, preferred_element_type=jnp.float32) + b, 0.0
        )
        if li + 1 < NUM_LAYERS:
            h = h.astype(jnp.bfloat16).astype(jnp.float32)
    return h


if __name__ == "__main__":
    key = jax.random.PRNGKey(0)
    kx, kp = jax.random.split(key)

    # Small shapes; block_batch=16 exercises multiple grid steps (3 tiles)
    # plus a ragged last tile (rows 40..47 are padded reads, dropped).
    batch = 40
    x = jax.random.normal(kx, (batch, IN_FEATURES), dtype=jnp.float32)
    params = init_params(kp)

    out = nunet_forward(x, params, block_batch=16)
    out = jax.block_until_ready(out)
    assert out.shape == (batch, 1), out.shape

    ref_bf16 = reference_forward_bf16(x, params)
    ref_f32 = reference_forward_f32(x, params)
    assert jnp.allclose(out, ref_bf16, atol=1e-3, rtol=1e-3), \
        "mismatch vs bf16-path reference"
    assert jnp.allclose(out, ref_f32, atol=5e-2, rtol=5e-2), \
        "mismatch vs f32 reference"

    print("KERNEL_OK")
</pallas_src>

<mosaic_0001>
module attributes {stable_mosaic.version = 11 : i64} {
  func.func @nunet_kernel(%arg0: i32, %arg1: memref<16x361xf32, #tpu.memory_space<vmem>>, %arg2: memref<361x32xbf16, #tpu.memory_space<vmem>>, %arg3: memref<1x32xf32, #tpu.memory_space<vmem>>, %arg4: memref<32x64xbf16, #tpu.memory_space<vmem>>, %arg5: memref<1x64xf32, #tpu.memory_space<vmem>>, %arg6: memref<64x128xbf16, #tpu.memory_space<vmem>>, %arg7: memref<1x128xf32, #tpu.memory_space<vmem>>, %arg8: memref<128x64xbf16, #tpu.memory_space<vmem>>, %arg9: memref<1x64xf32, #tpu.memory_space<vmem>>, %arg10: memref<64x8xbf16, #tpu.memory_space<vmem>>, %arg11: memref<1x8xf32, #tpu.memory_space<vmem>>, %arg12: memref<1x8xbf16, #tpu.memory_space<vmem>>, %arg13: memref<1x1xf32, #tpu.memory_space<vmem>>, %arg14: memref<1x1x16xf32, #tpu.memory_space<vmem>>) attributes {dimension_semantics = [#tpu.dimension_semantics<parallel>], iteration_bounds = array<i64: 3>, scalar_prefetch = 0 : i64, scratch_operands = 0 : i64, tpu.core_type = #tpu.core_type<tc>, window_params = [{transform_indices = @transform_0, window_bounds = array<i64: 16, 361>}, {pipeline_mode = #tpu.pipeline_mode<synchronous>, transform_indices = @transform_1, window_bounds = array<i64: 361, 32>}, {pipeline_mode = #tpu.pipeline_mode<synchronous>, transform_indices = @transform_2, window_bounds = array<i64: 1, 32>}, {pipeline_mode = #tpu.pipeline_mode<synchronous>, transform_indices = @transform_3, window_bounds = array<i64: 32, 64>}, {pipeline_mode = #tpu.pipeline_mode<synchronous>, transform_indices = @transform_4, window_bounds = array<i64: 1, 64>}, {pipeline_mode = #tpu.pipeline_mode<synchronous>, transform_indices = @transform_5, window_bounds = array<i64: 64, 128>}, {pipeline_mode = #tpu.pipeline_mode<synchronous>, transform_indices = @transform_6, window_bounds = array<i64: 1, 128>}, {pipeline_mode = #tpu.pipeline_mode<synchronous>, transform_indices = @transform_7, window_bounds = array<i64: 128, 64>}, {pipeline_mode = #tpu.pipeline_mode<synchronous>, transform_indices = @transform_8, window_bounds = array<i64: 1, 64>}, {pipeline_mode = #tpu.pipeline_mode<synchronous>, transform_indices = @transform_9, window_bounds = array<i64: 64, 8>}, {pipeline_mode = #tpu.pipeline_mode<synchronous>, transform_indices = @transform_10, window_bounds = array<i64: 1, 8>}, {pipeline_mode = #tpu.pipeline_mode<synchronous>, transform_indices = @transform_11, window_bounds = array<i64: 1, 8>}, {pipeline_mode = #tpu.pipeline_mode<synchronous>, transform_indices = @transform_12, window_bounds = array<i64: 1, 1>}, {transform_indices = @transform_13, window_bounds = array<i64: 1, 1, 16>}]} {
    %c0 = arith.constant 0 : index
    %c0_0 = arith.constant 0 : index
    %0 = vector.load %arg1[%c0, %c0_0] : memref<16x361xf32, #tpu.memory_space<vmem>>, vector<16x361xf32>
    %1 = arith.truncf %0 : vector<16x361xf32> to vector<16x361xbf16>
    %c0_1 = arith.constant 0 : index
    %c0_2 = arith.constant 0 : index
    %2 = vector.load %arg2[%c0_1, %c0_2] : memref<361x32xbf16, #tpu.memory_space<vmem>>, vector<361x32xbf16>
    %cst = arith.constant dense<0.000000e+00> : vector<16x32xf32>
    %3 = tpu.matmul %1, %2, %cst {dimension_numbers = #tpu.dot_dimension_numbers<[1], [0], [0], [1], [0, 0, 1, 1], [], []>} : vector<16x361xbf16>, vector<361x32xbf16>, vector<16x32xf32> -> vector<16x32xf32>
    %c0_3 = arith.constant 0 : index
    %c0_4 = arith.constant 0 : index
    %4 = vector.load %arg3[%c0_3, %c0_4] : memref<1x32xf32, #tpu.memory_space<vmem>>, vector<1x32xf32>
    %5 = vector.broadcast %4 : vector<1x32xf32> to vector<16x32xf32>
    %6 = arith.addf %3, %5 : vector<16x32xf32>
    %cst_5 = arith.constant 0.000000e+00 : f32
    %7 = vector.broadcast %cst_5 : f32 to vector<16x32xf32>
    %8 = arith.maximumf %6, %7 : vector<16x32xf32>
    %9 = arith.truncf %8 : vector<16x32xf32> to vector<16x32xbf16>
    %c0_6 = arith.constant 0 : index
    %c0_7 = arith.constant 0 : index
    %10 = vector.load %arg4[%c0_6, %c0_7] : memref<32x64xbf16, #tpu.memory_space<vmem>>, vector<32x64xbf16>
    %cst_8 = arith.constant dense<0.000000e+00> : vector<16x64xf32>
    %11 = tpu.matmul %9, %10, %cst_8 {dimension_numbers = #tpu.dot_dimension_numbers<[1], [0], [0], [1], [0, 0, 1, 1], [], []>} : vector<16x32xbf16>, vector<32x64xbf16>, vector<16x64xf32> -> vector<16x64xf32>
    %c0_9 = arith.constant 0 : index
    %c0_10 = arith.constant 0 : index
    %12 = vector.load %arg5[%c0_9, %c0_10] : memref<1x64xf32, #tpu.memory_space<vmem>>, vector<1x64xf32>
    %13 = vector.broadcast %12 : vector<1x64xf32> to vector<16x64xf32>
    %14 = arith.addf %11, %13 : vector<16x64xf32>
    %cst_11 = arith.constant 0.000000e+00 : f32
    %15 = vector.broadcast %cst_11 : f32 to vector<16x64xf32>
    %16 = arith.maximumf %14, %15 : vector<16x64xf32>
    %17 = arith.truncf %16 : vector<16x64xf32> to vector<16x64xbf16>
    %c0_12 = arith.constant 0 : index
    %c0_13 = arith.constant 0 : index
    %18 = vector.load %arg6[%c0_12, %c0_13] : memref<64x128xbf16, #tpu.memory_space<vmem>>, vector<64x128xbf16>
    %cst_14 = arith.constant dense<0.000000e+00> : vector<16x128xf32>
    %19 = tpu.matmul %17, %18, %cst_14 {dimension_numbers = #tpu.dot_dimension_numbers<[1], [0], [0], [1], [0, 0, 1, 1], [], []>} : vector<16x64xbf16>, vector<64x128xbf16>, vector<16x128xf32> -> vector<16x128xf32>
    %c0_15 = arith.constant 0 : index
    %c0_16 = arith.constant 0 : index
    %20 = vector.load %arg7[%c0_15, %c0_16] : memref<1x128xf32, #tpu.memory_space<vmem>>, vector<1x128xf32>
    %21 = vector.broadcast %20 : vector<1x128xf32> to vector<16x128xf32>
    %22 = arith.addf %19, %21 : vector<16x128xf32>
    %cst_17 = arith.constant 0.000000e+00 : f32
    %23 = vector.broadcast %cst_17 : f32 to vector<16x128xf32>
    %24 = arith.maximumf %22, %23 : vector<16x128xf32>
    %25 = arith.truncf %24 : vector<16x128xf32> to vector<16x128xbf16>
    %c0_18 = arith.constant 0 : index
    %c0_19 = arith.constant 0 : index
    %26 = vector.load %arg8[%c0_18, %c0_19] : memref<128x64xbf16, #tpu.memory_space<vmem>>, vector<128x64xbf16>
    %cst_20 = arith.constant dense<0.000000e+00> : vector<16x64xf32>
    %27 = tpu.matmul %25, %26, %cst_20 {dimension_numbers = #tpu.dot_dimension_numbers<[1], [0], [0], [1], [0, 0, 1, 1], [], []>} : vector<16x128xbf16>, vector<128x64xbf16>, vector<16x64xf32> -> vector<16x64xf32>
    %c0_21 = arith.constant 0 : index
    %c0_22 = arith.constant 0 : index
    %28 = vector.load %arg9[%c0_21, %c0_22] : memref<1x64xf32, #tpu.memory_space<vmem>>, vector<1x64xf32>
    %29 = vector.broadcast %28 : vector<1x64xf32> to vector<16x64xf32>
    %30 = arith.addf %27, %29 : vector<16x64xf32>
    %cst_23 = arith.constant 0.000000e+00 : f32
    %31 = vector.broadcast %cst_23 : f32 to vector<16x64xf32>
    %32 = arith.maximumf %30, %31 : vector<16x64xf32>
    %33 = arith.truncf %32 : vector<16x64xf32> to vector<16x64xbf16>
    %c0_24 = arith.constant 0 : index
    %c0_25 = arith.constant 0 : index
    %34 = vector.load %arg10[%c0_24, %c0_25] : memref<64x8xbf16, #tpu.memory_space<vmem>>, vector<64x8xbf16>
    %cst_26 = arith.constant dense<0.000000e+00> : vector<16x8xf32>
    %35 = tpu.matmul %33, %34, %cst_26 {dimension_numbers = #tpu.dot_dimension_numbers<[1], [0], [0], [1], [0, 0, 1, 1], [], []>} : vector<16x64xbf16>, vector<64x8xbf16>, vector<16x8xf32> -> vector<16x8xf32>
    %c0_27 = arith.constant 0 : index
    %c0_28 = arith.constant 0 : index
    %36 = vector.load %arg11[%c0_27, %c0_28] : memref<1x8xf32, #tpu.memory_space<vmem>>, vector<1x8xf32>
    %37 = vector.broadcast %36 : vector<1x8xf32> to vector<16x8xf32>
    %38 = arith.addf %35, %37 : vector<16x8xf32>
    %cst_29 = arith.constant 0.000000e+00 : f32
    %39 = vector.broadcast %cst_29 : f32 to vector<16x8xf32>
    %40 = arith.maximumf %38, %39 : vector<16x8xf32>
    %41 = arith.truncf %40 : vector<16x8xf32> to vector<16x8xbf16>
    %c0_30 = arith.constant 0 : index
    %c0_31 = arith.constant 0 : index
    %42 = vector.load %arg12[%c0_30, %c0_31] : memref<1x8xbf16, #tpu.memory_space<vmem>>, vector<1x8xbf16>
    %cst_32 = arith.constant dense<0.000000e+00> : vector<1x16xf32>
    %43 = tpu.matmul %42, %41, %cst_32 {dimension_numbers = #tpu.dot_dimension_numbers<[1], [1], [0], [0], [0, 0, 1, 0], [], []>} : vector<1x8xbf16>, vector<16x8xbf16>, vector<1x16xf32> -> vector<1x16xf32>
    %c0_33 = arith.constant 0 : index
    %c0_34 = arith.constant 0 : index
    %44 = vector.load %arg13[%c0_33, %c0_34] : memref<1x1xf32, #tpu.memory_space<vmem>>, vector<1x1xf32>
    %45 = vector.broadcast %44 : vector<1x1xf32> to vector<1x16xf32>
    %46 = arith.addf %43, %45 : vector<1x16xf32>
    %cst_35 = arith.constant 0.000000e+00 : f32
    %47 = vector.broadcast %cst_35 : f32 to vector<1x16xf32>
    %48 = arith.maximumf %46, %47 : vector<1x16xf32>
    %49 = vector.shape_cast %48 : vector<1x16xf32> to vector<1x1x16xf32>
    %c0_36 = arith.constant 0 : index
    %c0_37 = arith.constant 0 : index
    %c0_38 = arith.constant 0 : index
    %50 = vector.load %arg14[%c0_36, %c0_37, %c0_38] : memref<1x1x16xf32, #tpu.memory_space<vmem>>, vector<1x1x16xf32>
    tpu.vector_store %arg14[%c0_36, %c0_37, %c0_38], %49 {strides = array<i32>} : memref<1x1x16xf32, #tpu.memory_space<vmem>>, vector<1x1x16xf32>,
    return
  }
  func.func @transform_0(%arg0: i32) -> (i32, i32) {
    %c0_i32 = arith.constant 0 : i32
    %c0_i32_0 = arith.constant 0 : i32
    return %arg0, %c0_i32 : i32, i32
  }
  func.func @transform_1(%arg0: i32) -> (i32, i32) {
    %c0_i32 = arith.constant 0 : i32
    %c0_i32_0 = arith.constant 0 : i32
    %c0_i32_1 = arith.constant 0 : i32
    return %c0_i32, %c0_i32_0 : i32, i32
  }
  func.func @transform_2(%arg0: i32) -> (i32, i32) {
    %c0_i32 = arith.constant 0 : i32
    %c0_i32_0 = arith.constant 0 : i32
    %c0_i32_1 = arith.constant 0 : i32
    return %c0_i32, %c0_i32_0 : i32, i32
  }
  func.func @transform_3(%arg0: i32) -> (i32, i32) {
    %c0_i32 = arith.constant 0 : i32
    %c0_i32_0 = arith.constant 0 : i32
    %c0_i32_1 = arith.constant 0 : i32
    return %c0_i32, %c0_i32_0 : i32, i32
  }
  func.func @transform_4(%arg0: i32) -> (i32, i32) {
    %c0_i32 = arith.constant 0 : i32
    %c0_i32_0 = arith.constant 0 : i32
    %c0_i32_1 = arith.constant 0 : i32
    return %c0_i32, %c0_i32_0 : i32, i32
  }
  func.func @transform_5(%arg0: i32) -> (i32, i32) {
    %c0_i32 = arith.constant 0 : i32
    %c0_i32_0 = arith.constant 0 : i32
    %c0_i32_1 = arith.constant 0 : i32
    return %c0_i32, %c0_i32_0 : i32, i32
  }
  func.func @transform_6(%arg0: i32) -> (i32, i32) {
    %c0_i32 = arith.constant 0 : i32
    %c0_i32_0 = arith.constant 0 : i32
    %c0_i32_1 = arith.constant 0 : i32
    return %c0_i32, %c0_i32_0 : i32, i32
  }
  func.func @transform_7(%arg0: i32) -> (i32, i32) {
    %c0_i32 = arith.constant 0 : i32
    %c0_i32_0 = arith.constant 0 : i32
    %c0_i32_1 = arith.constant 0 : i32
    return %c0_i32, %c0_i32_0 : i32, i32
  }
  func.func @transform_8(%arg0: i32) -> (i32, i32) {
    %c0_i32 = arith.constant 0 : i32
    %c0_i32_0 = arith.constant 0 : i32
    %c0_i32_1 = arith.constant 0 : i32
    return %c0_i32, %c0_i32_0 : i32, i32
  }
  func.func @transform_9(%arg0: i32) -> (i32, i32) {
    %c0_i32 = arith.constant 0 : i32
    %c0_i32_0 = arith.constant 0 : i32
    %c0_i32_1 = arith.constant 0 : i32
    return %c0_i32, %c0_i32_0 : i32, i32
  }
  func.func @transform_10(%arg0: i32) -> (i32, i32) {
    %c0_i32 = arith.constant 0 : i32
    %c0_i32_0 = arith.constant 0 : i32
    %c0_i32_1 = arith.constant 0 : i32
    return %c0_i32, %c0_i32_0 : i32, i32
  }
  func.func @transform_11(%arg0: i32) -> (i32, i32) {
    %c0_i32 = arith.constant 0 : i32
    %c0_i32_0 = arith.constant 0 : i32
    %c0_i32_1 = arith.constant 0 : i32
    return %c0_i32, %c0_i32_0 : i32, i32
  }
  func.func @transform_12(%arg0: i32) -> (i32, i32) {
    %c0_i32 = arith.constant 0 : i32
    %c0_i32_0 = arith.constant 0 : i32
    %c0_i32_1 = arith.constant 0 : i32
    return %c0_i32, %c0_i32_0 : i32, i32
  }
  func.func @transform_13(%arg0: i32) -> (i32, i32, i32) {
    %c0_i32 = arith.constant 0 : i32
    %c0_i32_0 = arith.constant 0 : i32
    %c0_i32_1 = arith.constant 0 : i32
    return %arg0, %c0_i32, %c0_i32_0 : i32, i32, i32
  }
}

</mosaic_0001>

<llo_original>
// kernel: _nunet_forward_impl.1
$region0: #{_nunet_forward_impl.1}
  #allocation0 [shape = 'u32[]', space=smem, size = 0x4, offset = 0x4, fixed_abs, tag = 'smem constant byte address 0x4 - core index']
  #allocation1 [shape = 'u32[72,128]{1,0:T(1,128)}', space=vmem, size = 0x9000, scoped, tag = 'internal scratch']
  #allocation2 [shape = 'f32[1,1]{1,0:T(1,128)S(1)}', space=vmem, size = 0x200, scoped, tag = 'scoped memory for _nunet_forward_impl.1']
  %s0 = inlined_call_operand.vmem [shape: f32[40,361], index: 0, kind: input, shape index: {}]
  %s1 = inlined_call_operand.vmem [shape: bf16[361,32], index: 1, kind: input, shape index: {}]
  %s2 = inlined_call_operand.vmem [shape: f32[1,32], index: 2, kind: input, shape index: {}]
  %s3 = inlined_call_operand.vmem [shape: bf16[32,64], index: 3, kind: input, shape index: {}]
  %s4 = inlined_call_operand.vmem [shape: f32[1,64], index: 4, kind: input, shape index: {}]
  %s5 = inlined_call_operand.vmem [shape: bf16[64,128], index: 5, kind: input, shape index: {}]
  %s6 = inlined_call_operand.vmem [shape: f32[1,128], index: 6, kind: input, shape index: {}]
  %s7 = inlined_call_operand.vmem [shape: bf16[128,64], index: 7, kind: input, shape index: {}]
  %s8 = inlined_call_operand.vmem [shape: f32[1,64], index: 8, kind: input, shape index: {}]
  %s9 = inlined_call_operand.vmem [shape: bf16[64,8], index: 9, kind: input, shape index: {}]
  %s10 = inlined_call_operand.vmem [shape: f32[1,8], index: 10, kind: input, shape index: {}]
  %s11 = inlined_call_operand.vmem [shape: bf16[1,8], index: 11, kind: input, shape index: {}]
  %s12 = inlined_call_operand.<no memory space> [shape: f32[1,1], index: 12, kind: input, shape index: {}]
  %s13 = inlined_call_operand.vmem [shape: f32[3,1,16], index: 13, kind: output, shape index: {}]
  %s14 = sld [smem:[#allocation0]]
  $region85: #{_nunet_forward_impl.1} parent=0
    _
  %s16 = ssub.s32 1, %s14
  %s17 = scalar_select 0, %s16, %s14
  %v18 = vstv %s12
  %19 = vst [vmem:[#allocation2] sm:$0x1] %v18
  loop: start=0, step=1, limit=5
  $region2: #{_nunet_forward_impl.1} parent=0 // loop_pre_header
    _
  $region3: #{_nunet_forward_impl.1} parent=0 // loop_header
    %s21 = sphi 0, %s25
    %p22 = scmp.ge.s32.totalorder %s21, 5
    %s31 = sphi 0, %s33
    %s34 = sphi 0, %s31
    %s35 = sphi 0, %s34
    %s51 = sphi 0, %s35
    %s55 = sphi 0, %s55
    %s57 = sphi 0, %s55
    %s58 = sphi 0, %s57
    %s72 = sphi 0, %s58
    %s76 = sphi 0, %s76
    %s78 = sphi 0, %s76
    %s79 = sphi 0, %s78
    %s93 = sphi 0, %s79
    %s97 = sphi 0, %s97
    %s99 = sphi 0, %s97
    %s100 = sphi 0, %s99
    %s114 = sphi 0, %s100
    %s118 = sphi 0, %s118
    %s120 = sphi 0, %s118
    %s121 = sphi 0, %s120
    %s135 = sphi 0, %s121
    %s139 = sphi 0, %s139
    %s141 = sphi 0, %s139
    %s142 = sphi 0, %s141
    %s156 = sphi 0, %s142
    %s160 = sphi 0, %s160
    %s162 = sphi 0, %s160
    %s163 = sphi 0, %s162
    %s177 = sphi 0, %s163
    %s181 = sphi 0, %s181
    %s183 = sphi 0, %s181
    %s184 = sphi 0, %s183
    %s198 = sphi 0, %s184
    %s202 = sphi 0, %s202
    %s204 = sphi 0, %s202
    %s205 = sphi 0, %s204
    %s219 = sphi 0, %s205
    %s223 = sphi 0, %s223
    %s225 = sphi 0, %s223
    %s226 = sphi 0, %s225
    %s240 = sphi 0, %s226
    %s244 = sphi 0, %s244
    %s246 = sphi 0, %s244
    %s247 = sphi 0, %s246
    %s261 = sphi 0, %s247
    %s265 = sphi 0, %s265
    %s267 = sphi 0, %s265
    %s268 = sphi 0, %s267
    %s282 = sphi 0, %s268
    %s286 = sphi 0, %s286
    %s288 = sphi 0, %s286
    %s289 = sphi 0, %s288
    %s303 = sphi 0, %s289
    %s309 = sphi 0, %s311
    %s312 = sphi 0, %s309
    %s313 = sphi 0, %s312
    %s329 = sphi 0, %s313
  $region4: #{_nunet_forward_impl.1} parent=0 // loop_header_branch
    %24 = sbr.rel (%p22) target = $region8
  $region5: #{_nunet_forward_impl.1} parent=0 // loop_body
    %s26 = ssub.s32 %s21, 1
    %s27 = ssub.s32 %s21, 2
    %s28 = sadd.s32 %s21, 1
    %s29 = ssub.s32 %s21, %s28
    %p30 = scmp.eq.s32.totalorder %s29, 0
    %s32 = sadd.s32 %s31, 1
    %s33 = scalar_select %p30, %s31, %s32
    %p36 = pneg %p30
    %p37 = scmp.eq.s32.totalorder %s21, 2
    %p38 = por %p36, %p37
    %p39 = scmp.ne.s32.totalorder %s31, %s34
    %p40 = scmp.eq.s32.totalorder %s21, 0
    %p41 = por %p39, %p40
    %p42 = scmp.ne.s32.totalorder %s31, %s34
    %p43 = scmp.eq.s32.totalorder %s26, 2
    %p44 = por %p42, %p43
    %p45 = scmp.ne.s32.totalorder %s34, %s35
    %p46 = scmp.eq.s32.totalorder %s26, 0
    %p47 = por %p45, %p46
    %p48 = scmp.ne.s32.totalorder %s34, %s35
    %p49 = scmp.eq.s32.totalorder %s27, 2
    %p50 = por %p48, %p49
    %p52 = scmp.ne.s32.totalorder %s35, %s51
    %p53 = scmp.eq.s32.totalorder %s27, 0
    %p54 = por %p52, %p53
    %s56 = sadd.s32 %s55, 1
    %p59 = scmp.eq.s32.totalorder %s21, 2
    %p60 = scmp.ne.s32.totalorder %s55, %s57
    %p61 = scmp.eq.s32.totalorder %s21, 0
    %p62 = por %p60, %p61
    %p63 = scmp.ne.s32.totalorder %s55, %s57
    %p64 = scmp.eq.s32.totalorder %s26, 2
    %p65 = por %p63, %p64
    %p66 = scmp.ne.s32.totalorder %s57, %s58
    %p67 = scmp.eq.s32.totalorder %s26, 0
    %p68 = por %p66, %p67
    %p69 = scmp.ne.s32.totalorder %s57, %s58
    %p70 = scmp.eq.s32.totalorder %s27, 2
    %p71 = por %p69, %p70
    %p73 = scmp.ne.s32.totalorder %s58, %s72
    %p74 = scmp.eq.s32.totalorder %s27, 0
    %p75 = por %p73, %p74
    %s77 = sadd.s32 %s76, 1
    %p80 = scmp.eq.s32.totalorder %s21, 2
    %p81 = scmp.ne.s32.totalorder %s76, %s78
    %p82 = scmp.eq.s32.totalorder %s21, 0
    %p83 = por %p81, %p82
    %p84 = scmp.ne.s32.totalorder %s76, %s78
    %p85 = scmp.eq.s32.totalorder %s26, 2
    %p86 = por %p84, %p85
    %p87 = scmp.ne.s32.totalorder %s78, %s79
    %p88 = scmp.eq.s32.totalorder %s26, 0
    %p89 = por %p87, %p88
    %p90 = scmp.ne.s32.totalorder %s78, %s79
    %p91 = scmp.eq.s32.totalorder %s27, 2
    %p92 = por %p90, %p91
    %p94 = scmp.ne.s32.totalorder %s79, %s93
    %p95 = scmp.eq.s32.totalorder %s27, 0
    %p96 = por %p94, %p95
    %s98 = sadd.s32 %s97, 1
    %p101 = scmp.eq.s32.totalorder %s21, 2
    %p102 = scmp.ne.s32.totalorder %s97, %s99
    %p103 = scmp.eq.s32.totalorder %s21, 0
    %p104 = por %p102, %p103
    %p105 = scmp.ne.s32.totalorder %s97, %s99
    %p106 = scmp.eq.s32.totalorder %s26, 2
    %p107 = por %p105, %p106
    %p108 = scmp.ne.s32.totalorder %s99, %s100
    %p109 = scmp.eq.s32.totalorder %s26, 0
    %p110 = por %p108, %p109
    %p111 = scmp.ne.s32.totalorder %s99, %s100
    %p112 = scmp.eq.s32.totalorder %s27, 2
    %p113 = por %p111, %p112
    %p115 = scmp.ne.s32.totalorder %s100, %s114
    %p116 = scmp.eq.s32.totalorder %s27, 0
    %p117 = por %p115, %p116
    %s119 = sadd.s32 %s118, 1
    %p122 = scmp.eq.s32.totalorder %s21, 2
    %p123 = scmp.ne.s32.totalorder %s118, %s120
    %p124 = scmp.eq.s32.totalorder %s21, 0
    %p125 = por %p123, %p124
    %p126 = scmp.ne.s32.totalorder %s118, %s120
    %p127 = scmp.eq.s32.totalorder %s26, 2
    %p128 = por %p126, %p127
    %p129 = scmp.ne.s32.totalorder %s120, %s121
    %p130 = scmp.eq.s32.totalorder %s26, 0
    %p131 = por %p129, %p130
    %p132 = scmp.ne.s32.totalorder %s120, %s121
    %p133 = scmp.eq.s32.totalorder %s27, 2
    %p134 = por %p132, %p133
    %p136 = scmp.ne.s32.totalorder %s121, %s135
    %p137 = scmp.eq.s32.totalorder %s27, 0
    %p138 = por %p136, %p137
    %s140 = sadd.s32 %s139, 1
    %p143 = scmp.eq.s32.totalorder %s21, 2
    %p144 = scmp.ne.s32.totalorder %s139, %s141
    %p145 = scmp.eq.s32.totalorder %s21, 0
    %p146 = por %p144, %p145
    %p147 = scmp.ne.s32.totalorder %s139, %s141
    %p148 = scmp.eq.s32.totalorder %s26, 2
    %p149 = por %p147, %p148
    %p150 = scmp.ne.s32.totalorder %s141, %s142
    %p151 = scmp.eq.s32.totalorder %s26, 0
    %p152 = por %p150, %p151
    %p153 = scmp.ne.s32.totalorder %s141, %s142
    %p154 = scmp.eq.s32.totalorder %s27, 2
    %p155 = por %p153, %p154
    %p157 = scmp.ne.s32.totalorder %s142, %s156
    %p158 = scmp.eq.s32.totalorder %s27, 0
    %p159 = por %p157, %p158
    %s161 = sadd.s32 %s160, 1
    %p164 = scmp.eq.s32.totalorder %s21, 2
    %p165 = scmp.ne.s32.totalorder %s160, %s162
    %p166 = scmp.eq.s32.totalorder %s21, 0
    %p167 = por %p165, %p166
    %p168 = scmp.ne.s32.totalorder %s160, %s162
    %p169 = scmp.eq.s32.totalorder %s26, 2
    %p170 = por %p168, %p169
    %p171 = scmp.ne.s32.totalorder %s162, %s163
    %p172 = scmp.eq.s32.totalorder %s26, 0
    %p173 = por %p171, %p172
    %p174 = scmp.ne.s32.totalorder %s162, %s163
    %p175 = scmp.eq.s32.totalorder %s27, 2
    %p176 = por %p174, %p175
    %p178 = scmp.ne.s32.totalorder %s163, %s177
    %p179 = scmp.eq.s32.totalorder %s27, 0
    %p180 = por %p178, %p179
    %s182 = sadd.s32 %s181, 1
    %p185 = scmp.eq.s32.totalorder %s21, 2
    %p186 = scmp.ne.s32.totalorder %s181, %s183
    %p187 = scmp.eq.s32.totalorder %s21, 0
    %p188 = por %p186, %p187
    %p189 = scmp.ne.s32.totalorder %s181, %s183
    %p190 = scmp.eq.s32.totalorder %s26, 2
    %p191 = por %p189, %p190
    %p192 = scmp.ne.s32.totalorder %s183, %s184
    %p193 = scmp.eq.s32.totalorder %s26, 0
    %p194 = por %p192, %p193
    %p195 = scmp.ne.s32.totalorder %s183, %s184
    %p196 = scmp.eq.s32.totalorder %s27, 2
    %p197 = por %p195, %p196
    %p199 = scmp.ne.s32.totalorder %s184, %s198
    %p200 = scmp.eq.s32.totalorder %s27, 0
    %p201 = por %p199, %p200
    %s203 = sadd.s32 %s202, 1
    %p206 = scmp.eq.s32.totalorder %s21, 2
    %p207 = scmp.ne.s32.totalorder %s202, %s204
    %p208 = scmp.eq.s32.totalorder %s21, 0
    %p209 = por %p207, %p208
    %p210 = scmp.ne.s32.totalorder %s202, %s204
    %p211 = scmp.eq.s32.totalorder %s26, 2
    %p212 = por %p210, %p211
    %p213 = scmp.ne.s32.totalorder %s204, %s205
    %p214 = scmp.eq.s32.totalorder %s26, 0
    %p215 = por %p213, %p214
    %p216 = scmp.ne.s32.totalorder %s204, %s205
    %p217 = scmp.eq.s32.totalorder %s27, 2
    %p218 = por %p216, %p217
    %p220 = scmp.ne.s32.totalorder %s205, %s219
    %p221 = scmp.eq.s32.totalorder %s27, 0
    %p222 = por %p220, %p221
    %s224 = sadd.s32 %s223, 1
    %p227 = scmp.eq.s32.totalorder %s21, 2
    %p228 = scmp.ne.s32.totalorder %s223, %s225
    %p229 = scmp.eq.s32.totalorder %s21, 0
    %p230 = por %p228, %p229
    %p231 = scmp.ne.s32.totalorder %s223, %s225
    %p232 = scmp.eq.s32.totalorder %s26, 2
    %p233 = por %p231, %p232
    %p234 = scmp.ne.s32.totalorder %s225, %s226
    %p235 = scmp.eq.s32.totalorder %s26, 0
    %p236 = por %p234, %p235
    %p237 = scmp.ne.s32.totalorder %s225, %s226
    %p238 = scmp.eq.s32.totalorder %s27, 2
    %p239 = por %p237, %p238
    %p241 = scmp.ne.s32.totalorder %s226, %s240
    %p242 = scmp.eq.s32.totalorder %s27, 0
    %p243 = por %p241, %p242
    %s245 = sadd.s32 %s244, 1
    %p248 = scmp.eq.s32.totalorder %s21, 2
    %p249 = scmp.ne.s32.totalorder %s244, %s246
    %p250 = scmp.eq.s32.totalorder %s21, 0
    %p251 = por %p249, %p250
    %p252 = scmp.ne.s32.totalorder %s244, %s246
    %p253 = scmp.eq.s32.totalorder %s26, 2
    %p254 = por %p252, %p253
    %p255 = scmp.ne.s32.totalorder %s246, %s247
    %p256 = scmp.eq.s32.totalorder %s26, 0
    %p257 = por %p255, %p256
    %p258 = scmp.ne.s32.totalorder %s246, %s247
    %p259 = scmp.eq.s32.totalorder %s27, 2
    %p260 = por %p258, %p259
    %p262 = scmp.ne.s32.totalorder %s247, %s261
    %p263 = scmp.eq.s32.totalorder %s27, 0
    %p264 = por %p262, %p263
    %s266 = sadd.s32 %s265, 1
    %p269 = scmp.eq.s32.totalorder %s21, 2
    %p270 = scmp.ne.s32.totalorder %s265, %s267
    %p271 = scmp.eq.s32.totalorder %s21, 0
    %p272 = por %p270, %p271
    %p273 = scmp.ne.s32.totalorder %s265, %s267
    %p274 = scmp.eq.s32.totalorder %s26, 2
    %p275 = por %p273, %p274
    %p276 = scmp.ne.s32.totalorder %s267, %s268
    %p277 = scmp.eq.s32.totalorder %s26, 0
    %p278 = por %p276, %p277
    %p279 = scmp.ne.s32.totalorder %s267, %s268
    %p280 = scmp.eq.s32.totalorder %s27, 2
    %p281 = por %p279, %p280
    %p283 = scmp.ne.s32.totalorder %s268, %s282
    %p284 = scmp.eq.s32.totalorder %s27, 0
    %p285 = por %p283, %p284
    %s287 = sadd.s32 %s286, 1
    %p290 = scmp.eq.s32.totalorder %s21, 2
    %p291 = scmp.ne.s32.totalorder %s286, %s288
    %p292 = scmp.eq.s32.totalorder %s21, 0
    %p293 = por %p291, %p292
    %p294 = scmp.ne.s32.totalorder %s286, %s288
    %p295 = scmp.eq.s32.totalorder %s26, 2
    %p296 = por %p294, %p295
    %p297 = scmp.ne.s32.totalorder %s288, %s289
    %p298 = scmp.eq.s32.totalorder %s26, 0
    %p299 = por %p297, %p298
    %p300 = scmp.ne.s32.totalorder %s288, %s289
    %p301 = scmp.eq.s32.totalorder %s27, 2
    %p302 = por %p300, %p301
    %p304 = scmp.ne.s32.totalorder %s289, %s303
    %p305 = scmp.eq.s32.totalorder %s27, 0
    %p306 = por %p304, %p305
    %s307 = ssub.s32 %s21, %s28
    %p308 = scmp.eq.s32.totalorder %s307, 0
    %s310 = sadd.s32 %s309, 1
    %s311 = scalar_select %p308, %s309, %s310
    %p314 = pneg %p308
    %p315 = scmp.eq.s32.totalorder %s21, 2
    %p316 = por %p314, %p315
    %p317 = scmp.ne.s32.totalorder %s309, %s312
    %p318 = scmp.eq.s32.totalorder %s21, 0
    %p319 = por %p317, %p318
    %p320 = scmp.ne.s32.totalorder %s309, %s312
    %p321 = scmp.eq.s32.totalorder %s26, 2
    %p322 = por %p320, %p321
    %p323 = scmp.ne.s32.totalorder %s312, %s313
    %p324 = scmp.eq.s32.totalorder %s26, 0
    %p325 = por %p323, %p324
    %p326 = scmp.ne.s32.totalorder %s312, %s313
    %p327 = scmp.eq.s32.totalorder %s27, 2
    %p328 = por %p326, %p327
    %p330 = scmp.ne.s32.totalorder %s313, %s329
    %p331 = scmp.eq.s32.totalorder %s27, 0
    %p332 = por %p330, %p331
    %p333 = scmp.le.s32.totalorder 1, %s21
    %p334 = scmp.lt.s32.totalorder %s21, 4
    %p335 = pnand %p333, %p334
    %p336 = pneg %p335
    // Predicated region
    $region9: #{_nunet_forward_impl.1} parent=5 // pred_check
      _
    $region10: #{_nunet_forward_impl.1} parent=5 // pred_check_branch
      %338 = sbr.rel (%p335) target = $region12
    $region11: #{_nunet_forward_impl.1} parent=5 // pred_region
      %s339 = ssub.s32 %s21, 1
      // Predicated region
      $region13: #{_nunet_forward_impl.1} parent=11 // pred_check
        %p340 = pneg %p68
      $region14: #{_nunet_forward_impl.1} parent=11 // pred_check_branch
        %342 = sbr.rel (%p340) target = $region16
      $region15: #{_nunet_forward_impl.1} parent=11 // pred_region
        _
      $region16: #{_nunet_forward_impl.1} parent=11 // pred_fallthru
        _
      // Predicated region
      $region17: #{_nunet_forward_impl.1} parent=11 // pred_check
        %p343 = pneg %p89
      $region18: #{_nunet_forward_impl.1} parent=11 // pred_check_branch
        %345 = sbr.rel (%p343) target = $region20
      $region19: #{_nunet_forward_impl.1} parent=11 // pred_region
        _
      $region20: #{_nunet_forward_impl.1} parent=11 // pred_fallthru
        _
      // Predicated region
      $region21: #{_nunet_forward_impl.1} parent=11 // pred_check
        %p346 = pneg %p110
      $region22: #{_nunet_forward_impl.1} parent=11 // pred_check_branch
        %348 = sbr.rel (%p346) target = $region24
      $region23: #{_nunet_forward_impl.1} parent=11 // pred_region
        _
      $region24: #{_nunet_forward_impl.1} parent=11 // pred_fallthru
        _
      // Predicated region
      $region25: #{_nunet_forward_impl.1} parent=11 // pred_check
        %p349 = pneg %p131
      $region26: #{_nunet_forward_impl.1} parent=11 // pred_check_branch
        %351 = sbr.rel (%p349) target = $region28
      $region27: #{_nunet_forward_impl.1} parent=11 // pred_region
        _
      $region28: #{_nunet_forward_impl.1} parent=11 // pred_fallthru
        _
      // Predicated region
      $region29: #{_nunet_forward_impl.1} parent=11 // pred_check
        %p352 = pneg %p152
      $region30: #{_nunet_forward_impl.1} parent=11 // pred_check_branch
        %354 = sbr.rel (%p352) target = $region32
      $region31: #{_nunet_forward_impl.1} parent=11 // pred_region
        _
      $region32: #{_nunet_forward_impl.1} parent=11 // pred_fallthru
        _
      // Predicated region
      $region33: #{_nunet_forward_impl.1} parent=11 // pred_check
        %p355 = pneg %p173
      $region34: #{_nunet_forward_impl.1} parent=11 // pred_check_branch
        %357 = sbr.rel (%p355) target = $region36
      $region35: #{_nunet_forward_impl.1} parent=11 // pred_region
        _
      $region36: #{_nunet_forward_impl.1} parent=11 // pred_fallthru
        _
      // Predicated region
      $region37: #{_nunet_forward_impl.1} parent=11 // pred_check
        %p358 = pneg %p194
      $region38: #{_nunet_forward_impl.1} parent=11 // pred_check_branch
        %360 = sbr.rel (%p358) target = $region40
      $region39: #{_nunet_forward_impl.1} parent=11 // pred_region
        _
      $region40: #{_nunet_forward_impl.1} parent=11 // pred_fallthru
        _
      // Predicated region
      $region41: #{_nunet_forward_impl.1} parent=11 // pred_check
        %p361 = pneg %p215
      $region42: #{_nunet_forward_impl.1} parent=11 // pred_check_branch
        %363 = sbr.rel (%p361) target = $region44
      $region43: #{_nunet_forward_impl.1} parent=11 // pred_region
        _
      $region44: #{_nunet_forward_impl.1} parent=11 // pred_fallthru
        _
      // Predicated region
      $region45: #{_nunet_forward_impl.1} parent=11 // pred_check
        %p364 = pneg %p236
      $region46: #{_nunet_forward_impl.1} parent=11 // pred_check_branch
        %366 = sbr.rel (%p364) target = $region48
      $region47: #{_nunet_forward_impl.1} parent=11 // pred_region
        _
      $region48: #{_nunet_forward_impl.1} parent=11 // pred_fallthru
        _
      // Predicated region
      $region49: #{_nunet_forward_impl.1} parent=11 // pred_check
        %p367 = pneg %p257
      $region50: #{_nunet_forward_impl.1} parent=11 // pred_check_branch
        %369 = sbr.rel (%p367) target = $region52
      $region51: #{_nunet_forward_impl.1} parent=11 // pred_region
        _
      $region52: #{_nunet_forward_impl.1} parent=11 // pred_fallthru
        _
      // Predicated region
      $region53: #{_nunet_forward_impl.1} parent=11 // pred_check
        %p370 = pneg %p278
      $region54: #{_nunet_forward_impl.1} parent=11 // pred_check_branch
        %372 = sbr.rel (%p370) target = $region56
      $region55: #{_nunet_forward_impl.1} parent=11 // pred_region
        _
      $region56: #{_nunet_forward_impl.1} parent=11 // pred_fallthru
        _
      // Predicated region
      $region57: #{_nunet_forward_impl.1} parent=11 // pred_check
        %p373 = pneg %p299
      $region58: #{_nunet_forward_impl.1} parent=11 // pred_check_branch
        %375 = sbr.rel (%p373) target = $region60
      $region59: #{_nunet_forward_impl.1} parent=11 // pred_region
        _
      $region60: #{_nunet_forward_impl.1} parent=11 // pred_fallthru
        _
    $region12: #{_nunet_forward_impl.1} parent=5 // pred_fallthru
      _
    %p376 = scmp.lt.s32.totalorder %s21, 3
    // Predicated region
    $region61: #{_nunet_forward_impl.1} parent=5 // pred_check
      %p377 = pneg %p376
    $region62: #{_nunet_forward_impl.1} parent=5 // pred_check_branch
      %379 = sbr.rel (%p377) target = $region64
    $region63: #{_nunet_forward_impl.1} parent=5 // pred_region
      // Predicated region
      $region65: #{_nunet_forward_impl.1} parent=63 // pred_check
        %p380 = pneg %p41
      $region66: #{_nunet_forward_impl.1} parent=63 // pred_check_branch
        %382 = sbr.rel (%p380) target = $region68
      $region67: #{_nunet_forward_impl.1} parent=63 // pred_region
        %s383 = smul.u32 2, %s21
        %s384 = ssub.s32 5, %s383
        %p385 = scmp.lt.s32.totalorder %s384, 2
        %s386 = scalar_select %p385, %s384, 2
        %s387 = smul.u32 8, %s386
        %s388 = smul.u32 %s387, 3
        %p389 = scmp.lt.s32.totalorder %s383, 4
        %s390 = scalar_select %p389, %s383, 4
        %s391 = smul.addr %s390, 3
        %s392 = smul.addr %s391, 8
        %s393 = scalar_lea.vmem %s0, %s392
        %s394 = smul.u32 2, %s21
        %s395 = ssub.s32 5, %s394
        %p396 = scmp.lt.s32.totalorder %s395, 2
        %s397 = scalar_select %p396, %s395, 2
        %s398 = smul.u32 8, %s397
        %s399 = smul.u32 %s398, 3
      $region68: #{_nunet_forward_impl.1} parent=63 // pred_fallthru
        _
    $region64: #{_nunet_forward_impl.1} parent=5 // pred_fallthru
      _
    %p400 = scmp.le.s32.totalorder 1, %s21
    %p401 = scmp.lt.s32.totalorder %s21, 4
    %p402 = pnand %p400, %p401
    %p403 = pneg %p402
    // Predicated region
    $region69: #{_nunet_forward_impl.1} parent=5 // pred_check
      _
    $region70: #{_nunet_forward_impl.1} parent=5 // pred_check_branch
      %405 = sbr.rel (%p402) target = $region72
    $region71: #{_nunet_forward_impl.1} parent=5 // pred_region
      %s406 = ssub.s32 %s21, 1
      %s407 = smul.u32 2, %s26
      %s408 = ssub.s32 5, %s407
      %p409 = scmp.lt.s32.totalorder %s408, 2
      %s410 = scalar_select %p409, %s408, 2
      %s411 = smul.u32 8, %s410
      %s412 = smul.u32 %s411, 3
      %p413 = scmp.lt.s32.totalorder %s407, 4
      %s414 = scalar_select %p413, %s407, 4
      %s415 = smul.addr %s414, 3
      %s416 = smul.addr %s415, 8
      %s417 = scalar_lea.vmem %s0, %s416
      %p418 = pneg %p47
      %p419 = pneg %p44
      %p420 = pneg %p68
      %p421 = pneg %p65
      %p422 = pneg %p89
      %p423 = pneg %p86
      %p424 = pneg %p110
      %p425 = pneg %p107
      %p426 = pneg %p131
      %p427 = pneg %p128
      %p428 = pneg %p152
      %p429 = pneg %p149
      %p430 = pneg %p173
      %p431 = pneg %p170
      %p432 = pneg %p194
      %p433 = pneg %p191
      %p434 = pneg %p215
      %p435 = pneg %p212
      %p436 = pneg %p236
      %p437 = pneg %p233
      %p438 = pneg %p257
      %p439 = pneg %p254
      %p440 = pneg %p278
      %p441 = pneg %p275
      %p442 = pneg %p299
      %p443 = pneg %p296
      %p444 = pneg %p325
      %p445 = pneg %p322
      %p446 = scmp.lt.s32.totalorder %s26, 2
      %s447 = scalar_select %p446, %s26, 2
      %s448 = scalar_lea.vmem %s13, %s447
      %s449 = smul.u32 2, %s26
      %s450 = ssub.s32 5, %s449
      %p451 = scmp.lt.s32.totalorder %s450, 2
      %s452 = scalar_select %p451, %s450, 2
      %s453 = smul.u32 8, %s452
      %s454 = smul.u32 %s453, 3
      %p455 = scmp.lt.s32.totalorder %s449, 4
      %s456 = scalar_select %p455, %s449, 4
      %s457 = smul.addr %s456, 3
      %s458 = smul.addr %s457, 8
      %s459 = scalar_lea.vmem %s0, %s458
      %s460 = smul.u32 2, %s26
      %s461 = ssub.s32 5, %s460
      %p462 = scmp.lt.s32.totalorder %s461, 2
      %s463 = scalar_select %p462, %s461, 2
      %s464 = smul.u32 8, %s463
      %s465 = smul.u32 %s464, 3
      %p466 = scmp.lt.s32.totalorder %s26, 2
      %s467 = scalar_select %p466, %s26, 2
      %s468 = scalar_lea.vmem %s13, %s467
      %v470 = vld [vmem:[%s459] sm:$0xff]
      %v471 = vld [vmem:[%s459 + $0x8] sm:$0xff]
      %v472 = vld [vmem:[%s459 + $0x10] sm:$0xff]
      %v473 = vld [vmem:[%s459 + $0x18] sm:$0xff]
      %v474 = vld [vmem:[%s459 + $0x20] sm:$0xff]
      %v475 = vld [vmem:[%s459 + $0x28] sm:$0xff]
      %v476 = vpack.c.bf16 %v473, %v470
      %v477 = vpack.c.bf16 %v474, %v471
      %v478 = vpack.c.bf16 %v475, %v472
      %v479 = vld [vmem:[%s1] sm:$0xf]
      %v480 = vld [vmem:[%s1 + $0x4] sm:$0xf]
      %v481 = vld [vmem:[%s1 + $0x8] sm:$0xf]
      %v482 = vld [vmem:[%s1 + $0xc] sm:$0xf]
      %v483 = vld [vmem:[%s1 + $0x10] sm:$0xf]
      %v484 = vld [vmem:[%s1 + $0x14] sm:$0xf]
      %v485 = vld [vmem:[%s1 + $0x18] sm:$0xf]
      %v486 = vld [vmem:[%s1 + $0x1c] sm:$0xf]
      %v487 = vld [vmem:[%s1 + $0x20] sm:$0xf]
      %v488 = vld [vmem:[%s1 + $0x24] sm:$0xf]
      %v489 = vld [vmem:[%s1 + $0x28] sm:$0xf]
      %v490 = vld [vmem:[%s1 + $0x2c] sm:$0xf]
      %v491 = vld [vmem:[%s1 + $0x30] sm:$0xf]
      %v492 = vld [vmem:[%s1 + $0x34] sm:$0xf]
      %v493 = vld [vmem:[%s1 + $0x38] sm:$0xf]
      %v494 = vld [vmem:[%s1 + $0x3c] sm:$0xf]
      %v495 = vld [vmem:[%s1 + $0x40] sm:$0xf]
      %v496 = vld [vmem:[%s1 + $0x44] sm:$0xf]
      %v497 = vld [vmem:[%s1 + $0x48] sm:$0xf]
      %v498 = vld [vmem:[%s1 + $0x4c] sm:$0xf]
      %v499 = vld [vmem:[%s1 + $0x50] sm:$0xf]
      %v500 = vld [vmem:[%s1 + $0x54] sm:$0xf]
      %v501 = vld [vmem:[%s1 + $0x58] sm:$0xf]
      %v502 = vld [vmem:[%s1 + $0x5c] sm:$0xf]
      %v503 = vld [vmem:[%s1 + $0x60] sm:$0xf]
      %v504 = vld [vmem:[%s1 + $0x64] sm:$0xf]
      %v505 = vld [vmem:[%s1 + $0x68] sm:$0xf]
      %v506 = vld [vmem:[%s1 + $0x6c] sm:$0xf]
      %v507 = vld [vmem:[%s1 + $0x70] sm:$0xf]
      %v508 = vld [vmem:[%s1 + $0x74] sm:$0xf]
      %v509 = vld [vmem:[%s1 + $0x78] sm:$0xf]
      %v510 = vld [vmem:[%s1 + $0x7c] sm:$0xf]
      %v511 = vld [vmem:[%s1 + $0x80] sm:$0xf]
      %v512 = vld [vmem:[%s1 + $0x84] sm:$0xf]
      %v513 = vld [vmem:[%s1 + $0x88] sm:$0xf]
      %v514 = vld [vmem:[%s1 + $0x8c] sm:$0xf]
      %v515 = vld [vmem:[%s1 + $0x90] sm:$0xf]
      %v516 = vld [vmem:[%s1 + $0x94] sm:$0xf]
      %v517 = vld [vmem:[%s1 + $0x98] sm:$0xf]
      %v518 = vld [vmem:[%s1 + $0x9c] sm:$0xf]
      %v519 = vld [vmem:[%s1 + $0xa0] sm:$0xf]
      %v520 = vld [vmem:[%s1 + $0xa4] sm:$0xf]
      %v521 = vld [vmem:[%s1 + $0xa8] sm:$0xf]
      %v522 = vld [vmem:[%s1 + $0xac] sm:$0xf]
      %v523 = vld [vmem:[%s1 + $0xb0] sm:$0xf]
      %v524 = vld [vmem:[%s1 + $0xb4] sm:$0x1]
      %v525 = vld [vmem:[%s2] sm:$0x1]
      %v527 = vperm.slane %v525, 0
      %v575 = vunpack.c.l.b16 %v479
      %v576 = vunpack.c.l.b16 %v480
      %v577 = vunpack.c.l.b16 %v481
      %v578 = vunpack.c.l.b16 %v482
      %v579 = vunpack.c.l.b16 %v483
      %v580 = vunpack.c.l.b16 %v484
      %v581 = vunpack.c.l.b16 %v485
      %v582 = vunpack.c.l.b16 %v486
      %v583 = vunpack.c.l.b16 %v487
      %v584 = vunpack.c.l.b16 %v488
      %v585 = vunpack.c.l.b16 %v489
      %v586 = vunpack.c.l.b16 %v490
      %v587 = vunpack.c.l.b16 %v491
      %v588 = vunpack.c.l.b16 %v492
      %v589 = vunpack.c.l.b16 %v493
      %v590 = vunpack.c.l.b16 %v494
      %v591 = vunpack.c.l.b16 %v495
      %v592 = vunpack.c.l.b16 %v496
      %v593 = vunpack.c.l.b16 %v497
      %v594 = vunpack.c.l.b16 %v498
      %v595 = vunpack.c.l.b16 %v499
      %v596 = vunpack.c.l.b16 %v500
      %v597 = vunpack.c.l.b16 %v501
      %v598 = vunpack.c.l.b16 %v502
      %v599 = vunpack.c.l.b16 %v503
      %v600 = vunpack.c.l.b16 %v504
      %v601 = vunpack.c.l.b16 %v505
      %v602 = vunpack.c.l.b16 %v506
      %v603 = vunpack.c.l.b16 %v507
      %v604 = vunpack.c.l.b16 %v508
      %v605 = vunpack.c.l.b16 %v509
      %v606 = vunpack.c.l.b16 %v510
      %v607 = vunpack.c.l.b16 %v511
      %v608 = vunpack.c.l.b16 %v512
      %v609 = vunpack.c.l.b16 %v513
      %v610 = vunpack.c.l.b16 %v514
      %v611 = vunpack.c.l.b16 %v515
      %v612 = vunpack.c.l.b16 %v516
      %v613 = vunpack.c.l.b16 %v517
      %v614 = vunpack.c.l.b16 %v518
      %v615 = vunpack.c.l.b16 %v519
      %v616 = vunpack.c.l.b16 %v520
      %v617 = vunpack.c.l.b16 %v521
      %v618 = vunpack.c.l.b16 %v522
      %v619 = vunpack.c.l.b16 %v523
      %v620 = vunpack.c.l.b16 %v524
      %v621 = vpack.c.b16 %v576, %v575
      %v622 = vpack.c.b16 %v578, %v577
      %v623 = vpack.c.b16 %v580, %v579
      %v624 = vpack.c.b16 %v582, %v581
      %v625 = vpack.c.b16 %v584, %v583
      %v626 = vpack.c.b16 %v586, %v585
      %v627 = vpack.c.b16 %v588, %v587
      %v628 = vpack.c.b16 %v590, %v589
      %v629 = vpack.c.b16 %v592, %v591
      %v630 = vpack.c.b16 %v594, %v593
      %v631 = vpack.c.b16 %v596, %v595
      %v632 = vpack.c.b16 %v598, %v597
      %v633 = vpack.c.b16 %v600, %v599
      %v634 = vpack.c.b16 %v602, %v601
      %v635 = vpack.c.b16 %v604, %v603
      %v636 = vpack.c.b16 %v606, %v605
      %v637 = vpack.c.b16 %v608, %v607
      %v638 = vpack.c.b16 %v610, %v609
      %v639 = vpack.c.b16 %v612, %v611
      %v640 = vpack.c.b16 %v614, %v613
      %v641 = vpack.c.b16 %v616, %v615
      %v642 = vpack.c.b16 %v618, %v617
      %v643 = vpack.c.b16 %v620, %v619
      %vm666 = vcmask 859136
      %v668 = vsel %vm666, %v478, 0
      %vm670 = vcmask 1043456
      %vm671 = vcmask 1044480
      %v672 = vsel %vm670, 4294967295, 65535
      %v673 = vsel %vm671, %v672, 0
      %v675 = vand.u32 %v643, %v673
      %677 = vmatpush.bf16.msra.mxu0 %v628
      %678 = vmatpush.bf16.msra.mxu0 %v627
      %679 = vmatpush.bf16.msra.mxu0 %v626
      %680 = vmatpush.bf16.msra.mxu0 %v625
      %681 = vmatpush.bf16.msra.mxu0 %v624
      %682 = vmatpush.bf16.msra.mxu0 %v623
      %683 = vmatpush.bf16.msra.mxu0 %v622
      %684 = vmatpush.bf16.msra.mxu0 %v621
      %685 = vmatmul.bf16.gmra.mxu0 %v476
      %v686 = vpop.f32.mrf.mxu0
      %v687 = vadd.f32 %v527, %v686
      %v688 = vpop.f32.mrf.mxu0
      %v689 = vadd.f32 %v527, %v688
      %690 = vdwg.mxu0
      %691 = vmatpush.bf16.msra.mxu0 %v636
      %692 = vmatpush.bf16.msra.mxu0 %v635
      %693 = vmatpush.bf16.msra.mxu0 %v634
      %694 = vmatpush.bf16.msra.mxu0 %v633
      %695 = vmatpush.bf16.msra.mxu0 %v632
      %696 = vmatpush.bf16.msra.mxu0 %v631
      %697 = vmatpush.bf16.msra.mxu0 %v630
      %698 = vmatpush.bf16.msra.mxu0 %v629
      %699 = vmatmul.bf16.gmra.mxu0 %v477
      %v700 = vpop.f32.mrf.mxu0
      %v701 = vadd.f32 %v687, %v700
      %v702 = vpop.f32.mrf.mxu0
      %v703 = vadd.f32 %v689, %v702
      %704 = vdwg.mxu0
      %705 = vmatpush.bf16.msra.mxu0 0
      %706 = vmatpush.bf16.msra.mxu0 %v675
      %707 = vmatpush.bf16.msra.mxu0 %v642
      %708 = vmatpush.bf16.msra.mxu0 %v641
      %709 = vmatpush.bf16.msra.mxu0 %v640
      %710 = vmatpush.bf16.msra.mxu0 %v639
      %711 = vmatpush.bf16.msra.mxu0 %v638
      %712 = vmatpush.bf16.msra.mxu0 %v637
      %713 = vmatmul.bf16.gmra.mxu0 %v668
      %v714 = vpop.f32.mrf.mxu0
      %v715 = vadd.f32 %v701, %v714
      %v716 = vpop.f32.mrf.mxu0
      %v717 = vadd.f32 %v703, %v716
      %718 = vdwg.mxu0
      %v719 = vmax.f32 %v715, 0.0
      %v720 = vmax.f32 %v717, 0.0
      %v721 = vpack.c.bf16 %v720, %v719
      %v722 = vld [vmem:[%s3] sm:$0xf]
      %v723 = vld [vmem:[%s3 + $0x4] sm:$0xf]
      %v724 = vld [vmem:[%s3 + $0x8] sm:$0xf]
      %v725 = vld [vmem:[%s3 + $0xc] sm:$0xf]
      %v726 = vld [vmem:[%s4] sm:$0x1]
      %v728 = vperm.slane %v726, 0
      %v734 = vunpack.c.l.b16 %v722
      %v735 = vunpack.c.l.b16 %v723
      %v736 = vunpack.c.l.b16 %v724
      %v737 = vunpack.c.l.b16 %v725
      %v738 = vpack.c.b16 %v735, %v734
      %v739 = vpack.c.b16 %v737, %v736
      %vm742 = vcmask 261120
      %v744 = vsel %vm742, %v721, 0
      %746 = vmatpush.bf16.msra.mxu0 0
      %747 = vmatpush.bf16.msra.mxu0 0
      %748 = vmatpush.bf16.msra.mxu0 0
      %749 = vmatpush.bf16.msra.mxu0 0
      %750 = vmatpush.bf16.msra.mxu0 0
      %751 = vmatpush.bf16.msra.mxu0 0
      %752 = vmatpush.bf16.msra.mxu0 %v739
      %753 = vmatpush.bf16.msra.mxu0 %v738
      %754 = vmatmul.bf16.gmra.mxu0 %v744
      %v755 = vpop.f32.mrf.mxu0
      %v756 = vadd.f32 %v728, %v755
      %v757 = vpop.f32.mrf.mxu0
      %v758 = vadd.f32 %v728, %v757
      %759 = vdwg.mxu0
      %v760 = vmax.f32 %v756, 0.0
      %v761 = vmax.f32 %v758, 0.0
      %v762 = vpack.c.bf16 %v761, %v760
      %v763 = vld [vmem:[%s5] sm:$0xf]
      %v764 = vld [vmem:[%s5 + $0x4] sm:$0xf]
      %v765 = vld [vmem:[%s5 + $0x8] sm:$0xf]
      %v766 = vld [vmem:[%s5 + $0xc] sm:$0xf]
      %v767 = vld [vmem:[%s5 + $0x10] sm:$0xf]
      %v768 = vld [vmem:[%s5 + $0x14] sm:$0xf]
      %v769 = vld [vmem:[%s5 + $0x18] sm:$0xf]
      %v770 = vld [vmem:[%s5 + $0x1c] sm:$0xf]
      %v771 = vld [vmem:[%s6] sm:$0x1]
      %v773 = vperm.slane %v771, 0
      %v783 = vunpack.c.l.b16 %v763
      %v784 = vunpack.c.l.b16 %v764
      %v785 = vunpack.c.l.b16 %v765
      %v786 = vunpack.c.l.b16 %v766
      %v787 = vunpack.c.l.b16 %v767
      %v788 = vunpack.c.l.b16 %v768
      %v789 = vunpack.c.l.b16 %v769
      %v790 = vunpack.c.l.b16 %v770
      %v791 = vpack.c.b16 %v784, %v783
      %v792 = vpack.c.b16 %v786, %v785
      %v793 = vpack.c.b16 %v788, %v787
      %v794 = vpack.c.b16 %v790, %v789
      %vm799 = vcmask 523264
      %v801 = vsel %vm799, %v762, 0
      %803 = vmatpush.bf16.msra.mxu0 0
      %804 = vmatpush.bf16.msra.mxu0 0
      %805 = vmatpush.bf16.msra.mxu0 0
      %806 = vmatpush.bf16.msra.mxu0 0
      %807 = vmatpush.bf16.msra.mxu0 %v794
      %808 = vmatpush.bf16.msra.mxu0 %v793
      %809 = vmatpush.bf16.msra.mxu0 %v792
      %810 = vmatpush.bf16.msra.mxu0 %v791
      %811 = vmatmul.bf16.gmra.mxu0 %v801
      %v812 = vpop.f32.mrf.mxu0
      %v813 = vadd.f32 %v773, %v812
      %v814 = vpop.f32.mrf.mxu0
      %v815 = vadd.f32 %v773, %v814
      %816 = vdwg.mxu0
      %v817 = vmax.f32 %v813, 0.0
      %v818 = vmax.f32 %v815, 0.0
      %v819 = vpack.c.bf16 %v818, %v817
      %v820 = vld [vmem:[%s7] sm:$0xf]
      %v821 = vld [vmem:[%s7 + $0x4] sm:$0xf]
      %v822 = vld [vmem:[%s7 + $0x8] sm:$0xf]
      %v823 = vld [vmem:[%s7 + $0xc] sm:$0xf]
      %v824 = vld [vmem:[%s7 + $0x10] sm:$0xf]
      %v825 = vld [vmem:[%s7 + $0x14] sm:$0xf]
      %v826 = vld [vmem:[%s7 + $0x18] sm:$0xf]
      %v827 = vld [vmem:[%s7 + $0x1c] sm:$0xf]
      %v828 = vld [vmem:[%s7 + $0x20] sm:$0xf]
      %v829 = vld [vmem:[%s7 + $0x24] sm:$0xf]
      %v830 = vld [vmem:[%s7 + $0x28] sm:$0xf]
      %v831 = vld [vmem:[%s7 + $0x2c] sm:$0xf]
      %v832 = vld [vmem:[%s7 + $0x30] sm:$0xf]
      %v833 = vld [vmem:[%s7 + $0x34] sm:$0xf]
      %v834 = vld [vmem:[%s7 + $0x38] sm:$0xf]
      %v835 = vld [vmem:[%s7 + $0x3c] sm:$0xf]
      %v836 = vld [vmem:[%s8] sm:$0x1]
      %v838 = vperm.slane %v836, 0
      %v856 = vunpack.c.l.b16 %v820
      %v857 = vunpack.c.l.b16 %v821
      %v858 = vunpack.c.l.b16 %v822
      %v859 = vunpack.c.l.b16 %v823
      %v860 = vunpack.c.l.b16 %v824
      %v861 = vunpack.c.l.b16 %v825
      %v862 = vunpack.c.l.b16 %v826
      %v863 = vunpack.c.l.b16 %v827
      %v864 = vunpack.c.l.b16 %v828
      %v865 = vunpack.c.l.b16 %v829
      %v866 = vunpack.c.l.b16 %v830
      %v867 = vunpack.c.l.b16 %v831
      %v868 = vunpack.c.l.b16 %v832
      %v869 = vunpack.c.l.b16 %v833
      %v870 = vunpack.c.l.b16 %v834
      %v871 = vunpack.c.l.b16 %v835
      %v872 = vpack.c.b16 %v857, %v856
      %v873 = vpack.c.b16 %v859, %v858
      %v874 = vpack.c.b16 %v861, %v860
      %v875 = vpack.c.b16 %v863, %v862
      %v876 = vpack.c.b16 %v865, %v864
      %v877 = vpack.c.b16 %v867, %v866
      %v878 = vpack.c.b16 %v869, %v868
      %v879 = vpack.c.b16 %v871, %v870
      %888 = vmatpush.bf16.msra.mxu0 %v879
      %889 = vmatpush.bf16.msra.mxu0 %v878
      %890 = vmatpush.bf16.msra.mxu0 %v877
      %891 = vmatpush.bf16.msra.mxu0 %v876
      %892 = vmatpush.bf16.msra.mxu0 %v875
      %893 = vmatpush.bf16.msra.mxu0 %v874
      %894 = vmatpush.bf16.msra.mxu0 %v873
      %895 = vmatpush.bf16.msra.mxu0 %v872
      %896 = vmatmul.bf16.gmra.mxu0 %v819
      %v897 = vpop.f32.mrf.mxu0
      %v898 = vadd.f32 %v838, %v897
      %v899 = vpop.f32.mrf.mxu0
      %v900 = vadd.f32 %v838, %v899
      %901 = vdwg.mxu0
      %v902 = vmax.f32 %v898, 0.0
      %v903 = vmax.f32 %v900, 0.0
      %v904 = vpack.c.bf16 %v903, %v902
      %v905 = vld [vmem:[%s9] sm:$0xf]
      %v906 = vld [vmem:[%s9 + $0x4] sm:$0xf]
      %v907 = vld [vmem:[%s9 + $0x8] sm:$0xf]
      %v908 = vld [vmem:[%s9 + $0xc] sm:$0xf]
      %v909 = vld [vmem:[%s9 + $0x10] sm:$0xf]
      %v910 = vld [vmem:[%s9 + $0x14] sm:$0xf]
      %v911 = vld [vmem:[%s9 + $0x18] sm:$0xf]
      %v912 = vld [vmem:[%s9 + $0x1c] sm:$0xf]
      %v913 = vld [vmem:[%s10] sm:$0x1]
      %v915 = vperm.slane %v913, 0
      %v925 = vunpack.c.l.b16 %v905
      %v926 = vunpack.c.l.b16 %v906
      %v927 = vunpack.c.l.b16 %v907
      %v928 = vunpack.c.l.b16 %v908
      %v929 = vunpack.c.l.b16 %v909
      %v930 = vunpack.c.l.b16 %v910
      %v931 = vunpack.c.l.b16 %v911
      %v932 = vunpack.c.l.b16 %v912
      %v933 = vpack.c.b16 %v926, %v925
      %v934 = vpack.c.b16 %v928, %v927
      %v935 = vpack.c.b16 %v930, %v929
      %v936 = vpack.c.b16 %v932, %v931
      %v942 = vsel %vm799, %v904, 0
      %944 = vmatpush.bf16.msra.mxu0 0
      %945 = vmatpush.bf16.msra.mxu0 0
      %946 = vmatpush.bf16.msra.mxu0 0
      %947 = vmatpush.bf16.msra.mxu0 0
      %948 = vmatpush.bf16.msra.mxu0 %v936
      %949 = vmatpush.bf16.msra.mxu0 %v935
      %950 = vmatpush.bf16.msra.mxu0 %v934
      %951 = vmatpush.bf16.msra.mxu0 %v933
      %952 = vmatmul.bf16.gmra.mxu0 %v942
      %v953 = vpop.f32.mrf.mxu0
      %v954 = vadd.f32 %v915, %v953
      %v955 = vpop.f32.mrf.mxu0
      %v956 = vadd.f32 %v915, %v955
      %957 = vdwg.mxu0
      %v958 = vmax.f32 %v954, 0.0
      %v959 = vmax.f32 %v956, 0.0
      %v960 = vpack.c.bf16 %v959, %v958
      %v961 = vld [vmem:[%s11] sm:$0x1]
      %v962 = vld [vmem:[#allocation2] sm:$0x1]
      %964 = vset.pattern.permute.xlu0 0
      %965 = vperm.xlu0 %964, %v962
      %v966 = vpop.permute.xlu0 %965
      %v968 = vperm.slane %v966, 0
      %vm969 = vcmask 64512
      %v971 = vsel %vm969, %v961, 0
      %v974 = vsel %vm969, %v960, 0
      %976 = vmatpush.bf16.xpose.msra.mxu0 0
      %977 = vmatpush.bf16.xpose.msra.mxu0 0
      %978 = vmatpush.bf16.xpose.msra.mxu0 0
      %979 = vmatpush.bf16.xpose.msra.mxu0 0
      %980 = vmatpush.bf16.xpose.msra.mxu0 0
      %981 = vmatpush.bf16.xpose.msra.mxu0 0
      %982 = vmatpush.bf16.xpose.msra.mxu0 0
      %983 = vmatpush.bf16.xpose.msra.mxu0 %v974
      %984 = vmatmul.bf16.gmra.mxu0 %v971
      %v985 = vpop.f32.mrf.mxu0
      %v986 = vadd.f32 %v968, %v985
      %v987 = vpop.f32.mrf.mxu0
      %988 = vdwg.mxu0
      %v989 = vmax.f32 %v986, 0.0
      %vm990 = vcmask 122880
      %991 = vst.msk [vmem:[%s468] sm:$0x1] %vm990, %v989
      %p992 = scmp.lt.s32.totalorder %s26, 2
      %s993 = scalar_select %p992, %s26, 2
      %s994 = scalar_lea.vmem %s13, %s993
      // Predicated region
      $region73: #{_nunet_forward_impl.1} parent=71 // pred_check
        %p995 = pneg %p322
      $region74: #{_nunet_forward_impl.1} parent=71 // pred_check_branch
        %997 = sbr.rel (%p995) target = $region76
      $region75: #{_nunet_forward_impl.1} parent=71 // pred_region
        _
      $region76: #{_nunet_forward_impl.1} parent=71 // pred_fallthru
        _
    $region72: #{_nunet_forward_impl.1} parent=5 // pred_fallthru
      _
    %p998 = scmp.le.s32.totalorder 2, %s21
    // Predicated region
    $region77: #{_nunet_forward_impl.1} parent=5 // pred_check
      %p999 = pneg %p998
    $region78: #{_nunet_forward_impl.1} parent=5 // pred_check_branch
      %1001 = sbr.rel (%p999) target = $region80
    $region79: #{_nunet_forward_impl.1} parent=5 // pred_region
      %s1002 = ssub.s32 %s21, 2
      // Predicated region
      $region81: #{_nunet_forward_impl.1} parent=79 // pred_check
        %p1003 = pneg %p328
      $region82: #{_nunet_forward_impl.1} parent=79 // pred_check_branch
        %1005 = sbr.rel (%p1003) target = $region84
      $region83: #{_nunet_forward_impl.1} parent=79 // pred_region
        %p1006 = scmp.lt.s32.totalorder %s27, 2
        %s1007 = scalar_select %p1006, %s27, 2
        %s1008 = scalar_lea.vmem %s13, %s1007
      $region84: #{_nunet_forward_impl.1} parent=79 // pred_fallthru
        _
    $region80: #{_nunet_forward_impl.1} parent=5 // pred_fallthru
      _
  $region6: #{_nunet_forward_impl.1} parent=0 // loop_footer
    %s25 = sadd.s32 1, %s21
  $region7: #{_nunet_forward_impl.1} parent=0 // loop_footer_branch
    %20 = sbr.rel target = $region3
  $region8: #{_nunet_forward_impl.1} parent=0 // loop_exit
    _

</llo_original>
